<compile_context>
chip_gen: v5e
topology: v5e:2x2
jax: 0.10.0
libtpu: 0.0.40
codegen_flags: <defaults>
</compile_context>

<pallas_src>
import functools
import math

import jax
import jax.numpy as jnp
from jax.experimental import pallas as pl
from jax.experimental.pallas import tpu as pltpu


def _round_up(x, m):
    return ((x + m - 1) // m) * m


def _mlp_kernel(p1_ref, p2_ref, *refs, num_h):
    (w_p1_ref, b_p1_ref, w_p2_ref, b_p2_ref,
     w_all_ref, b_all_ref) = refs[0:6]
    if num_h > 0:
        w_h_ref, b_h_ref = refs[6], refs[7]
        w_out_ref, b_out_ref, out_ref = refs[8], refs[9], refs[10]
    else:
        w_h_ref = b_h_ref = None
        w_out_ref, b_out_ref, out_ref = refs[6], refs[7], refs[8]

    bf16 = jnp.bfloat16
    f32 = jnp.float32

    # Stage 1: the two per-player linears (bf16 MXU operands, f32 accumulation).
    # relu(concat(a, b)) == concat(relu(a), relu(b)) so each half is relu'd
    # independently; dropout is eval-mode identity.
    h1 = jnp.dot(p1_ref[...].astype(bf16), w_p1_ref[...],
                 preferred_element_type=f32) + b_p1_ref[...]
    h2 = jnp.dot(p2_ref[...].astype(bf16), w_p2_ref[...],
                 preferred_element_type=f32) + b_p2_ref[...]
    h1 = jnp.maximum(h1, 0.0)
    h2 = jnp.maximum(h2, 0.0)

    # Stage 2: relu(concat(h1, h2)) @ w_all == h1 @ w_all[:H] + h2 @ w_all[H:].
    x = (jnp.dot(h1.astype(bf16), w_all_ref[0], preferred_element_type=f32)
         + jnp.dot(h2.astype(bf16), w_all_ref[1], preferred_element_type=f32)
         + b_all_ref[...])
    x = jnp.maximum(x, 0.0)

    # depth - 2 extra hidden layers (static unroll).
    for l in range(num_h):
        x = jnp.dot(x.astype(bf16), w_h_ref[l],
                    preferred_element_type=f32) + b_h_ref[l]
        x = jnp.maximum(x, 0.0)

    # hidden -> 1 head: VPU multiply + lane reduction (keeps the MXU free and
    # avoids an N=1 lane-sparse MXU result path).
    out_ref[...] = (jnp.sum(x * w_out_ref[...], axis=-1, keepdims=True)
                    + b_out_ref[...])


def _choose_tile_b(B, p1_sp, p2_sp, hidden, num_h, tile_b_max):
    """Pick a batch tile: as large as the (generation-aware) VMEM budget allows,
    shrunk to the batch to avoid padding waste, split >=2 ways for megacore."""
    try:
        info = pltpu.get_tpu_info()
        vmem_phys = int(getattr(info, "vmem_capacity_bytes", 64 * 1024 * 1024))
    except Exception:
        vmem_phys = 64 * 1024 * 1024          # conservative (v7x per-TC)
    budget = int(vmem_phys * 0.75)            # ~96 MiB v5e/v6e, ~48 MiB v7x

    # Resident (single-buffered) weights: bf16 matmul weights + f32 biases/head.
    weight_elems = ((p1_sp + p2_sp) * hidden + 2 * hidden * hidden
                    + num_h * hidden * hidden)
    bias_elems = (3 + num_h) * hidden + hidden + 1
    weight_bytes = 2 * weight_elems + 4 * bias_elems

    # Per-batch-row VMEM: double-buffered f32 input tiles + output tile, plus
    # peak live f32/bf16 intermediates (~6 hidden-wide rows) and slack.
    per_row = 2 * 4 * (p1_sp + p2_sp) + 2 * 4 + 24 * hidden + 64

    avail = budget - weight_bytes - (1 << 20)
    tile_cap = max(8, avail // per_row)
    tile_b = max(8, (min(tile_b_max, tile_cap) // 8) * 8)

    # >= 2 grid steps for large batches so v7x shards the batch across both
    # TensorCores (one extra grid step is noise on single-core chips), and
    # shrink the tile toward cdiv(B, n_tiles) so padding waste stays small.
    n_tiles = pl.cdiv(B, tile_b)
    if n_tiles == 1 and B >= 256:
        n_tiles = 2
    tile_b = min(tile_b, _round_up(pl.cdiv(B, n_tiles), 8))
    return tile_b, budget


def sub_act_multi_critic_mlp(p1_act, p2_act, params, *, tile_b_max=4096):
    """SubActMultiCriticMlp.forward (eval mode) as one batch-gridded Pallas kernel."""
    B = p1_act.shape[0]
    p1_sp = params["w_p1"].shape[0]
    p2_sp = params["w_p2"].shape[0]
    hidden = params["w_p1"].shape[1]
    num_h = int(params["w_h"].shape[0])

    p1 = p1_act.astype(jnp.float32)
    p2 = p2_act.astype(jnp.float32)

    bf16 = jnp.bfloat16
    # Split w_all into its two contraction halves: (2H, H) -> (2, H, H).
    w_all2 = params["w_all"].reshape(2, hidden, hidden)
    weight_args = [params["w_p1"].astype(bf16), params["b_p1"],
                   params["w_p2"].astype(bf16), params["b_p2"],
                   w_all2.astype(bf16), params["b_all"]]
    if num_h > 0:
        weight_args += [params["w_h"].astype(bf16), params["b_h"]]
    weight_args += [params["w_out"].reshape(1, hidden),
                    params["b_out"].reshape(1, 1)]

    tile_b, vmem_budget = _choose_tile_b(B, p1_sp, p2_sp, hidden, num_h,
                                         tile_b_max)
    grid = (pl.cdiv(B, tile_b),)   # ragged last tile handled by Pallas, no pad

    flops = 2 * B * ((p1_sp + p2_sp) * hidden + 2 * hidden * hidden
                     + num_h * hidden * hidden + hidden)
    bytes_accessed = int(4 * (p1.size + p2.size + B)
                         + sum(int(a.size) * a.dtype.itemsize
                               for a in weight_args))
    cost = pl.CostEstimate(flops=flops, transcendentals=0,
                           bytes_accessed=bytes_accessed)

    def _call(single_buffer_weights):
        def _resident(arr):
            nd = arr.ndim
            if single_buffer_weights:
                # Constant index_map -> second pipeline buffer is VMEM waste.
                return pl.BlockSpec(arr.shape, lambda i, nd=nd: (0,) * nd,
                                    pipeline_mode=pl.Buffered(1))
            return pl.BlockSpec(arr.shape, lambda i, nd=nd: (0,) * nd)

        in_specs = ([pl.BlockSpec((tile_b, p1_sp), lambda i: (i, 0)),
                     pl.BlockSpec((tile_b, p2_sp), lambda i: (i, 0))]
                    + [_resident(a) for a in weight_args])

        return pl.pallas_call(
            functools.partial(_mlp_kernel, num_h=num_h),
            grid=grid,
            in_specs=in_specs,
            out_specs=pl.BlockSpec((tile_b, 1), lambda i: (i, 0)),
            out_shape=jax.ShapeDtypeStruct((B, 1), jnp.float32),
            compiler_params=pltpu.CompilerParams(
                dimension_semantics=("parallel",),
                vmem_limit_bytes=vmem_budget),
            cost_estimate=cost,
        )(p1, p2, *weight_args)

    try:
        return _call(True)
    except Exception:
        # Fallback if this JAX build rejects pl.Buffered(1) on pipelined inputs.
        return _call(False)


def init_params(key, p1_act_sp, p2_act_sp, hidden, depth=2):
    """nn.Linear default init U(-1/sqrt(fan_in), 1/sqrt(fan_in)); weights stored
    as [in_features, out_features] (transposed vs. PyTorch)."""
    depth = depth if depth >= 2 else 2
    num_h = depth - 2

    def linear(k, fan_in, fan_out):
        kw, kb = jax.random.split(k)
        lim = 1.0 / math.sqrt(fan_in)
        w = jax.random.uniform(kw, (fan_in, fan_out), jnp.float32, -lim, lim)
        b = jax.random.uniform(kb, (1, fan_out), jnp.float32, -lim, lim)
        return w, b

    keys = jax.random.split(key, 4 + num_h)
    w_p1, b_p1 = linear(keys[0], p1_act_sp, hidden)
    w_p2, b_p2 = linear(keys[1], p2_act_sp, hidden)
    w_all, b_all = linear(keys[2], 2 * hidden, hidden)
    w_h_list, b_h_list = [], []
    for i in range(num_h):
        w, b = linear(keys[3 + i], hidden, hidden)
        w_h_list.append(w)
        b_h_list.append(b)
    w_h = (jnp.stack(w_h_list) if num_h
           else jnp.zeros((0, hidden, hidden), jnp.float32))
    b_h = (jnp.stack(b_h_list) if num_h
           else jnp.zeros((0, 1, hidden), jnp.float32))
    w_out, b_out = linear(keys[3 + num_h], hidden, 1)
    return dict(w_p1=w_p1, b_p1=b_p1, w_p2=w_p2, b_p2=b_p2,
                w_all=w_all, b_all=b_all, w_h=w_h, b_h=b_h,
                w_out=w_out, b_out=b_out)


def _reference(p1_act, p2_act, p):
    """Reference that mirrors the kernel's bf16-operand / f32-accumulate matmuls."""
    bf16, f32 = jnp.bfloat16, jnp.float32

    def mm(a, w):
        return jnp.dot(a.astype(bf16), w.astype(bf16),
                       preferred_element_type=f32)

    p1_h = mm(p1_act.astype(f32), p["w_p1"]) + p["b_p1"]
    p2_h = mm(p2_act.astype(f32), p["w_p2"]) + p["b_p2"]
    x = jax.nn.relu(jnp.concatenate([p1_h, p2_h], axis=-1))
    x = jax.nn.relu(mm(x, p["w_all"]) + p["b_all"])
    for l in range(p["w_h"].shape[0]):
        x = jax.nn.relu(mm(x, p["w_h"][l]) + p["b_h"][l])
    return x @ p["w_out"] + p["b_out"]


if __name__ == "__main__":
    key = jax.random.PRNGKey(0)
    k_p1, k_p2, k_param2, k_param3, k_b1, k_b2 = jax.random.split(key, 6)

    P1_SP, P2_SP, HIDDEN = 6, 6, 32

    # Small case, depth=2 (no extra hidden layers) and depth=3 (exercises hlayers).
    B = 8
    p1_act = jax.random.normal(k_p1, (B, P1_SP), jnp.float32)
    p2_act = jax.random.normal(k_p2, (B, P2_SP), jnp.float32)
    for depth, kp in ((2, k_param2), (3, k_param3)):
        params = init_params(kp, P1_SP, P2_SP, HIDDEN, depth=depth)
        out = jax.block_until_ready(
            sub_act_multi_critic_mlp(p1_act, p2_act, params))
        ref = _reference(p1_act, p2_act, params)
        assert out.shape == (B, 1)
        assert jnp.allclose(out, ref, atol=2e-2, rtol=2e-2), (
            f"mismatch vs reference (depth={depth})")

    # Multi-tile grid with a ragged last tile (no host padding).
    B2 = 300
    p1_b = jax.random.normal(k_b1, (B2, P1_SP), jnp.float32)
    p2_b = jax.random.normal(k_b2, (B2, P2_SP), jnp.float32)
    params = init_params(k_param3, P1_SP, P2_SP, HIDDEN, depth=3)
    out = jax.block_until_ready(
        sub_act_multi_critic_mlp(p1_b, p2_b, params, tile_b_max=96))
    ref = _reference(p1_b, p2_b, params)
    assert out.shape == (B2, 1)
    assert jnp.allclose(out, ref, atol=2e-2, rtol=2e-2), (
        "mismatch vs reference (multi-tile / ragged)")

    print("KERNEL_OK")
</pallas_src>

<mosaic_0001>
module attributes {stable_mosaic.version = 11 : i64} {
  func.func @_mlp_kernel(%arg0: i32, %arg1: memref<8x6xf32, #tpu.memory_space<vmem>>, %arg2: memref<8x6xf32, #tpu.memory_space<vmem>>, %arg3: memref<6x32xbf16, #tpu.memory_space<vmem>>, %arg4: memref<1x32xf32, #tpu.memory_space<vmem>>, %arg5: memref<6x32xbf16, #tpu.memory_space<vmem>>, %arg6: memref<1x32xf32, #tpu.memory_space<vmem>>, %arg7: memref<2x32x32xbf16, #tpu.memory_space<vmem>>, %arg8: memref<1x32xf32, #tpu.memory_space<vmem>>, %arg9: memref<1x32xf32, #tpu.memory_space<vmem>>, %arg10: memref<1x1xf32, #tpu.memory_space<vmem>>, %arg11: memref<8x1xf32, #tpu.memory_space<vmem>>) attributes {dimension_semantics = [#tpu.dimension_semantics<parallel>], iteration_bounds = array<i64: 1>, scalar_prefetch = 0 : i64, scratch_operands = 0 : i64, tpu.core_type = #tpu.core_type<tc>, window_params = [{transform_indices = @transform_0, window_bounds = array<i64: 8, 6>}, {transform_indices = @transform_1, window_bounds = array<i64: 8, 6>}, {pipeline_mode = #tpu.pipeline_mode<synchronous>, transform_indices = @transform_2, window_bounds = array<i64: 6, 32>}, {pipeline_mode = #tpu.pipeline_mode<synchronous>, transform_indices = @transform_3, window_bounds = array<i64: 1, 32>}, {pipeline_mode = #tpu.pipeline_mode<synchronous>, transform_indices = @transform_4, window_bounds = array<i64: 6, 32>}, {pipeline_mode = #tpu.pipeline_mode<synchronous>, transform_indices = @transform_5, window_bounds = array<i64: 1, 32>}, {pipeline_mode = #tpu.pipeline_mode<synchronous>, transform_indices = @transform_6, window_bounds = array<i64: 2, 32, 32>}, {pipeline_mode = #tpu.pipeline_mode<synchronous>, transform_indices = @transform_7, window_bounds = array<i64: 1, 32>}, {pipeline_mode = #tpu.pipeline_mode<synchronous>, transform_indices = @transform_8, window_bounds = array<i64: 1, 32>}, {pipeline_mode = #tpu.pipeline_mode<synchronous>, transform_indices = @transform_9, window_bounds = array<i64: 1, 1>}, {transform_indices = @transform_10, window_bounds = array<i64: 8, 1>}]} {
    %c0 = arith.constant 0 : index
    %c0_0 = arith.constant 0 : index
    %0 = vector.load %arg1[%c0, %c0_0] : memref<8x6xf32, #tpu.memory_space<vmem>>, vector<8x6xf32>
    %1 = arith.truncf %0 : vector<8x6xf32> to vector<8x6xbf16>
    %c0_1 = arith.constant 0 : index
    %c0_2 = arith.constant 0 : index
    %2 = vector.load %arg3[%c0_1, %c0_2] : memref<6x32xbf16, #tpu.memory_space<vmem>>, vector<6x32xbf16>
    %cst = arith.constant dense<0.000000e+00> : vector<8x32xf32>
    %3 = tpu.matmul %1, %2, %cst {dimension_numbers = #tpu.dot_dimension_numbers<[1], [0], [0], [1], [0, 0, 1, 1], [], []>} : vector<8x6xbf16>, vector<6x32xbf16>, vector<8x32xf32> -> vector<8x32xf32>
    %c0_3 = arith.constant 0 : index
    %c0_4 = arith.constant 0 : index
    %4 = vector.load %arg4[%c0_3, %c0_4] : memref<1x32xf32, #tpu.memory_space<vmem>>, vector<1x32xf32>
    %5 = vector.broadcast %4 : vector<1x32xf32> to vector<8x32xf32>
    %6 = arith.addf %3, %5 : vector<8x32xf32>
    %c0_5 = arith.constant 0 : index
    %c0_6 = arith.constant 0 : index
    %7 = vector.load %arg2[%c0_5, %c0_6] : memref<8x6xf32, #tpu.memory_space<vmem>>, vector<8x6xf32>
    %8 = arith.truncf %7 : vector<8x6xf32> to vector<8x6xbf16>
    %c0_7 = arith.constant 0 : index
    %c0_8 = arith.constant 0 : index
    %9 = vector.load %arg5[%c0_7, %c0_8] : memref<6x32xbf16, #tpu.memory_space<vmem>>, vector<6x32xbf16>
    %cst_9 = arith.constant dense<0.000000e+00> : vector<8x32xf32>
    %10 = tpu.matmul %8, %9, %cst_9 {dimension_numbers = #tpu.dot_dimension_numbers<[1], [0], [0], [1], [0, 0, 1, 1], [], []>} : vector<8x6xbf16>, vector<6x32xbf16>, vector<8x32xf32> -> vector<8x32xf32>
    %c0_10 = arith.constant 0 : index
    %c0_11 = arith.constant 0 : index
    %11 = vector.load %arg6[%c0_10, %c0_11] : memref<1x32xf32, #tpu.memory_space<vmem>>, vector<1x32xf32>
    %12 = vector.broadcast %11 : vector<1x32xf32> to vector<8x32xf32>
    %13 = arith.addf %10, %12 : vector<8x32xf32>
    %cst_12 = arith.constant 0.000000e+00 : f32
    %14 = vector.broadcast %cst_12 : f32 to vector<8x32xf32>
    %15 = arith.maximumf %6, %14 : vector<8x32xf32>
    %cst_13 = arith.constant 0.000000e+00 : f32
    %16 = vector.broadcast %cst_13 : f32 to vector<8x32xf32>
    %17 = arith.maximumf %13, %16 : vector<8x32xf32>
    %18 = arith.truncf %15 : vector<8x32xf32> to vector<8x32xbf16>
    %c0_14 = arith.constant 0 : index
    %c0_15 = arith.constant 0 : index
    %c0_16 = arith.constant 0 : index
    %19 = vector.load %arg7[%c0_14, %c0_15, %c0_16] : memref<2x32x32xbf16, #tpu.memory_space<vmem>>, vector<1x32x32xbf16>
    %20 = vector.shape_cast %19 : vector<1x32x32xbf16> to vector<32x32xbf16>
    %cst_17 = arith.constant dense<0.000000e+00> : vector<8x32xf32>
    %21 = tpu.matmul %18, %20, %cst_17 {dimension_numbers = #tpu.dot_dimension_numbers<[1], [0], [0], [1], [0, 0, 1, 1], [], []>} : vector<8x32xbf16>, vector<32x32xbf16>, vector<8x32xf32> -> vector<8x32xf32>
    %22 = arith.truncf %17 : vector<8x32xf32> to vector<8x32xbf16>
    %c1 = arith.constant 1 : index
    %c0_18 = arith.constant 0 : index
    %c0_19 = arith.constant 0 : index
    %23 = vector.load %arg7[%c1, %c0_18, %c0_19] : memref<2x32x32xbf16, #tpu.memory_space<vmem>>, vector<1x32x32xbf16>
    %24 = vector.shape_cast %23 : vector<1x32x32xbf16> to vector<32x32xbf16>
    %cst_20 = arith.constant dense<0.000000e+00> : vector<8x32xf32>
    %25 = tpu.matmul %22, %24, %cst_20 {dimension_numbers = #tpu.dot_dimension_numbers<[1], [0], [0], [1], [0, 0, 1, 1], [], []>} : vector<8x32xbf16>, vector<32x32xbf16>, vector<8x32xf32> -> vector<8x32xf32>
    %26 = arith.addf %21, %25 : vector<8x32xf32>
    %c0_21 = arith.constant 0 : index
    %c0_22 = arith.constant 0 : index
    %27 = vector.load %arg8[%c0_21, %c0_22] : memref<1x32xf32, #tpu.memory_space<vmem>>, vector<1x32xf32>
    %28 = vector.broadcast %27 : vector<1x32xf32> to vector<8x32xf32>
    %29 = arith.addf %26, %28 : vector<8x32xf32>
    %cst_23 = arith.constant 0.000000e+00 : f32
    %30 = vector.broadcast %cst_23 : f32 to vector<8x32xf32>
    %31 = arith.maximumf %29, %30 : vector<8x32xf32>
    %c0_24 = arith.constant 0 : index
    %c0_25 = arith.constant 0 : index
    %32 = vector.load %arg9[%c0_24, %c0_25] : memref<1x32xf32, #tpu.memory_space<vmem>>, vector<1x32xf32>
    %33 = vector.broadcast %32 : vector<1x32xf32> to vector<8x32xf32>
    %34 = arith.mulf %31, %33 : vector<8x32xf32>
    %cst_26 = arith.constant dense<0.000000e+00> : vector<8xf32>
    %35 = vector.multi_reduction <add>, %34, %cst_26 [1] : vector<8x32xf32> to vector<8xf32>
    %36 = vector.shape_cast %35 : vector<8xf32> to vector<8x1xf32>
    %c0_27 = arith.constant 0 : index
    %c0_28 = arith.constant 0 : index
    %37 = vector.load %arg10[%c0_27, %c0_28] : memref<1x1xf32, #tpu.memory_space<vmem>>, vector<1x1xf32>
    %38 = vector.broadcast %37 : vector<1x1xf32> to vector<8x1xf32>
    %39 = arith.addf %36, %38 : vector<8x1xf32>
    %c0_29 = arith.constant 0 : index
    %c0_30 = arith.constant 0 : index
    %40 = vector.load %arg11[%c0_29, %c0_30] : memref<8x1xf32, #tpu.memory_space<vmem>>, vector<8x1xf32>
    tpu.vector_store %arg11[%c0_29, %c0_30], %39 {strides = array<i32>} : memref<8x1xf32, #tpu.memory_space<vmem>>, vector<8x1xf32>,
    return
  }
  func.func @transform_0(%arg0: i32) -> (i32, i32) {
    %c0_i32 = arith.constant 0 : i32
    %c0_i32_0 = arith.constant 0 : i32
    return %arg0, %c0_i32 : i32, i32
  }
  func.func @transform_1(%arg0: i32) -> (i32, i32) {
    %c0_i32 = arith.constant 0 : i32
    %c0_i32_0 = arith.constant 0 : i32
    return %arg0, %c0_i32 : i32, i32
  }
  func.func @transform_2(%arg0: i32) -> (i32, i32) {
    %c0_i32 = arith.constant 0 : i32
    %c0_i32_0 = arith.constant 0 : i32
    %c0_i32_1 = arith.constant 0 : i32
    return %c0_i32, %c0_i32_0 : i32, i32
  }
  func.func @transform_3(%arg0: i32) -> (i32, i32) {
    %c0_i32 = arith.constant 0 : i32
    %c0_i32_0 = arith.constant 0 : i32
    %c0_i32_1 = arith.constant 0 : i32
    return %c0_i32, %c0_i32_0 : i32, i32
  }
  func.func @transform_4(%arg0: i32) -> (i32, i32) {
    %c0_i32 = arith.constant 0 : i32
    %c0_i32_0 = arith.constant 0 : i32
    %c0_i32_1 = arith.constant 0 : i32
    return %c0_i32, %c0_i32_0 : i32, i32
  }
  func.func @transform_5(%arg0: i32) -> (i32, i32) {
    %c0_i32 = arith.constant 0 : i32
    %c0_i32_0 = arith.constant 0 : i32
    %c0_i32_1 = arith.constant 0 : i32
    return %c0_i32, %c0_i32_0 : i32, i32
  }
  func.func @transform_6(%arg0: i32) -> (i32, i32, i32) {
    %c0_i32 = arith.constant 0 : i32
    %c0_i32_0 = arith.constant 0 : i32
    %c0_i32_1 = arith.constant 0 : i32
    %c0_i32_2 = arith.constant 0 : i32
    return %c0_i32, %c0_i32_0, %c0_i32_1 : i32, i32, i32
  }
  func.func @transform_7(%arg0: i32) -> (i32, i32) {
    %c0_i32 = arith.constant 0 : i32
    %c0_i32_0 = arith.constant 0 : i32
    %c0_i32_1 = arith.constant 0 : i32
    return %c0_i32, %c0_i32_0 : i32, i32
  }
  func.func @transform_8(%arg0: i32) -> (i32, i32) {
    %c0_i32 = arith.constant 0 : i32
    %c0_i32_0 = arith.constant 0 : i32
    %c0_i32_1 = arith.constant 0 : i32
    return %c0_i32, %c0_i32_0 : i32, i32
  }
  func.func @transform_9(%arg0: i32) -> (i32, i32) {
    %c0_i32 = arith.constant 0 : i32
    %c0_i32_0 = arith.constant 0 : i32
    %c0_i32_1 = arith.constant 0 : i32
    return %c0_i32, %c0_i32_0 : i32, i32
  }
  func.func @transform_10(%arg0: i32) -> (i32, i32) {
    %c0_i32 = arith.constant 0 : i32
    %c0_i32_0 = arith.constant 0 : i32
    return %arg0, %c0_i32 : i32, i32
  }
}

module attributes {stable_mosaic.version = 11 : i64} {
  func.func @_mlp_kernel(%arg0: i32, %arg1: memref<8x6xf32, #tpu.memory_space<vmem>>, %arg2: memref<8x6xf32, #tpu.memory_space<vmem>>, %arg3: memref<6x32xbf16, #tpu.memory_space<vmem>>, %arg4: memref<1x32xf32, #tpu.memory_space<vmem>>, %arg5: memref<6x32xbf16, #tpu.memory_space<vmem>>, %arg6: memref<1x32xf32, #tpu.memory_space<vmem>>, %arg7: memref<2x32x32xbf16, #tpu.memory_space<vmem>>, %arg8: memref<1x32xf32, #tpu.memory_space<vmem>>, %arg9: memref<1x32xf32, #tpu.memory_space<vmem>>, %arg10: memref<1x1xf32, #tpu.memory_space<vmem>>, %arg11: memref<8x1xf32, #tpu.memory_space<vmem>>) attributes {dimension_semantics = [#tpu.dimension_semantics<parallel>], iteration_bounds = array<i64: 1>, scalar_prefetch = 0 : i64, scratch_operands = 0 : i64, tpu.core_type = #tpu.core_type<tc>, window_params = [{transform_indices = @transform_0, window_bounds = array<i64: 8, 6>}, {transform_indices = @transform_1, window_bounds = array<i64: 8, 6>}, {pipeline_mode = #tpu.pipeline_mode<synchronous>, transform_indices = @transform_2, window_bounds = array<i64: 6, 32>}, {pipeline_mode = #tpu.pipeline_mode<synchronous>, transform_indices = @transform_3, window_bounds = array<i64: 1, 32>}, {pipeline_mode = #tpu.pipeline_mode<synchronous>, transform_indices = @transform_4, window_bounds = array<i64: 6, 32>}, {pipeline_mode = #tpu.pipeline_mode<synchronous>, transform_indices = @transform_5, window_bounds = array<i64: 1, 32>}, {pipeline_mode = #tpu.pipeline_mode<synchronous>, transform_indices = @transform_6, window_bounds = array<i64: 2, 32, 32>}, {pipeline_mode = #tpu.pipeline_mode<synchronous>, transform_indices = @transform_7, window_bounds = array<i64: 1, 32>}, {pipeline_mode = #tpu.pipeline_mode<synchronous>, transform_indices = @transform_8, window_bounds = array<i64: 1, 32>}, {pipeline_mode = #tpu.pipeline_mode<synchronous>, transform_indices = @transform_9, window_bounds = array<i64: 1, 1>}, {transform_indices = @transform_10, window_bounds = array<i64: 8, 1>}]} {
    %c0 = arith.constant 0 : index
    %c0_0 = arith.constant 0 : index
    %0 = vector.load %arg1[%c0, %c0_0] : memref<8x6xf32, #tpu.memory_space<vmem>>, vector<8x6xf32>
    %1 = arith.truncf %0 : vector<8x6xf32> to vector<8x6xbf16>
    %c0_1 = arith.constant 0 : index
    %c0_2 = arith.constant 0 : index
    %2 = vector.load %arg3[%c0_1, %c0_2] : memref<6x32xbf16, #tpu.memory_space<vmem>>, vector<6x32xbf16>
    %cst = arith.constant dense<0.000000e+00> : vector<8x32xf32>
    %3 = tpu.matmul %1, %2, %cst {dimension_numbers = #tpu.dot_dimension_numbers<[1], [0], [0], [1], [0, 0, 1, 1], [], []>} : vector<8x6xbf16>, vector<6x32xbf16>, vector<8x32xf32> -> vector<8x32xf32>
    %c0_3 = arith.constant 0 : index
    %c0_4 = arith.constant 0 : index
    %4 = vector.load %arg4[%c0_3, %c0_4] : memref<1x32xf32, #tpu.memory_space<vmem>>, vector<1x32xf32>
    %5 = vector.broadcast %4 : vector<1x32xf32> to vector<8x32xf32>
    %6 = arith.addf %3, %5 : vector<8x32xf32>
    %c0_5 = arith.constant 0 : index
    %c0_6 = arith.constant 0 : index
    %7 = vector.load %arg2[%c0_5, %c0_6] : memref<8x6xf32, #tpu.memory_space<vmem>>, vector<8x6xf32>
    %8 = arith.truncf %7 : vector<8x6xf32> to vector<8x6xbf16>
    %c0_7 = arith.constant 0 : index
    %c0_8 = arith.constant 0 : index
    %9 = vector.load %arg5[%c0_7, %c0_8] : memref<6x32xbf16, #tpu.memory_space<vmem>>, vector<6x32xbf16>
    %cst_9 = arith.constant dense<0.000000e+00> : vector<8x32xf32>
    %10 = tpu.matmul %8, %9, %cst_9 {dimension_numbers = #tpu.dot_dimension_numbers<[1], [0], [0], [1], [0, 0, 1, 1], [], []>} : vector<8x6xbf16>, vector<6x32xbf16>, vector<8x32xf32> -> vector<8x32xf32>
    %c0_10 = arith.constant 0 : index
    %c0_11 = arith.constant 0 : index
    %11 = vector.load %arg6[%c0_10, %c0_11] : memref<1x32xf32, #tpu.memory_space<vmem>>, vector<1x32xf32>
    %12 = vector.broadcast %11 : vector<1x32xf32> to vector<8x32xf32>
    %13 = arith.addf %10, %12 : vector<8x32xf32>
    %cst_12 = arith.constant 0.000000e+00 : f32
    %14 = vector.broadcast %cst_12 : f32 to vector<8x32xf32>
    %15 = arith.maximumf %6, %14 : vector<8x32xf32>
    %cst_13 = arith.constant 0.000000e+00 : f32
    %16 = vector.broadcast %cst_13 : f32 to vector<8x32xf32>
    %17 = arith.maximumf %13, %16 : vector<8x32xf32>
    %18 = arith.truncf %15 : vector<8x32xf32> to vector<8x32xbf16>
    %c0_14 = arith.constant 0 : index
    %c0_15 = arith.constant 0 : index
    %c0_16 = arith.constant 0 : index
    %19 = vector.load %arg7[%c0_14, %c0_15, %c0_16] : memref<2x32x32xbf16, #tpu.memory_space<vmem>>, vector<1x32x32xbf16>
    %20 = vector.shape_cast %19 : vector<1x32x32xbf16> to vector<32x32xbf16>
    %cst_17 = arith.constant dense<0.000000e+00> : vector<8x32xf32>
    %21 = tpu.matmul %18, %20, %cst_17 {dimension_numbers = #tpu.dot_dimension_numbers<[1], [0], [0], [1], [0, 0, 1, 1], [], []>} : vector<8x32xbf16>, vector<32x32xbf16>, vector<8x32xf32> -> vector<8x32xf32>
    %22 = arith.truncf %17 : vector<8x32xf32> to vector<8x32xbf16>
    %c1 = arith.constant 1 : index
    %c0_18 = arith.constant 0 : index
    %c0_19 = arith.constant 0 : index
    %23 = vector.load %arg7[%c1, %c0_18, %c0_19] : memref<2x32x32xbf16, #tpu.memory_space<vmem>>, vector<1x32x32xbf16>
    %24 = vector.shape_cast %23 : vector<1x32x32xbf16> to vector<32x32xbf16>
    %cst_20 = arith.constant dense<0.000000e+00> : vector<8x32xf32>
    %25 = tpu.matmul %22, %24, %cst_20 {dimension_numbers = #tpu.dot_dimension_numbers<[1], [0], [0], [1], [0, 0, 1, 1], [], []>} : vector<8x32xbf16>, vector<32x32xbf16>, vector<8x32xf32> -> vector<8x32xf32>
    %26 = arith.addf %21, %25 : vector<8x32xf32>
    %c0_21 = arith.constant 0 : index
    %c0_22 = arith.constant 0 : index
    %27 = vector.load %arg8[%c0_21, %c0_22] : memref<1x32xf32, #tpu.memory_space<vmem>>, vector<1x32xf32>
    %28 = vector.broadcast %27 : vector<1x32xf32> to vector<8x32xf32>
    %29 = arith.addf %26, %28 : vector<8x32xf32>
    %cst_23 = arith.constant 0.000000e+00 : f32
    %30 = vector.broadcast %cst_23 : f32 to vector<8x32xf32>
    %31 = arith.maximumf %29, %30 : vector<8x32xf32>
    %c0_24 = arith.constant 0 : index
    %c0_25 = arith.constant 0 : index
    %32 = vector.load %arg9[%c0_24, %c0_25] : memref<1x32xf32, #tpu.memory_space<vmem>>, vector<1x32xf32>
    %33 = vector.broadcast %32 : vector<1x32xf32> to vector<8x32xf32>
    %34 = arith.mulf %31, %33 : vector<8x32xf32>
    %cst_26 = arith.constant dense<0.000000e+00> : vector<8xf32>
    %35 = vector.multi_reduction <add>, %34, %cst_26 [1] : vector<8x32xf32> to vector<8xf32>
    %36 = vector.shape_cast %35 : vector<8xf32> to vector<8x1xf32>
    %c0_27 = arith.constant 0 : index
    %c0_28 = arith.constant 0 : index
    %37 = vector.load %arg10[%c0_27, %c0_28] : memref<1x1xf32, #tpu.memory_space<vmem>>, vector<1x1xf32>
    %38 = vector.broadcast %37 : vector<1x1xf32> to vector<8x1xf32>
    %39 = arith.addf %36, %38 : vector<8x1xf32>
    %c0_29 = arith.constant 0 : index
    %c0_30 = arith.constant 0 : index
    %40 = vector.load %arg11[%c0_29, %c0_30] : memref<8x1xf32, #tpu.memory_space<vmem>>, vector<8x1xf32>
    tpu.vector_store %arg11[%c0_29, %c0_30], %39 {strides = array<i32>} : memref<8x1xf32, #tpu.memory_space<vmem>>, vector<8x1xf32>,
    return
  }
  func.func @transform_0(%arg0: i32) -> (i32, i32) {
    %c0_i32 = arith.constant 0 : i32
    %c0_i32_0 = arith.constant 0 : i32
    return %arg0, %c0_i32 : i32, i32
  }
  func.func @transform_1(%arg0: i32) -> (i32, i32) {
    %c0_i32 = arith.constant 0 : i32
    %c0_i32_0 = arith.constant 0 : i32
    return %arg0, %c0_i32 : i32, i32
  }
  func.func @transform_2(%arg0: i32) -> (i32, i32) {
    %c0_i32 = arith.constant 0 : i32
    %c0_i32_0 = arith.constant 0 : i32
    %c0_i32_1 = arith.constant 0 : i32
    return %c0_i32, %c0_i32_0 : i32, i32
  }
  func.func @transform_3(%arg0: i32) -> (i32, i32) {
    %c0_i32 = arith.constant 0 : i32
    %c0_i32_0 = arith.constant 0 : i32
    %c0_i32_1 = arith.constant 0 : i32
    return %c0_i32, %c0_i32_0 : i32, i32
  }
  func.func @transform_4(%arg0: i32) -> (i32, i32) {
    %c0_i32 = arith.constant 0 : i32
    %c0_i32_0 = arith.constant 0 : i32
    %c0_i32_1 = arith.constant 0 : i32
    return %c0_i32, %c0_i32_0 : i32, i32
  }
  func.func @transform_5(%arg0: i32) -> (i32, i32) {
    %c0_i32 = arith.constant 0 : i32
    %c0_i32_0 = arith.constant 0 : i32
    %c0_i32_1 = arith.constant 0 : i32
    return %c0_i32, %c0_i32_0 : i32, i32
  }
  func.func @transform_6(%arg0: i32) -> (i32, i32, i32) {
    %c0_i32 = arith.constant 0 : i32
    %c0_i32_0 = arith.constant 0 : i32
    %c0_i32_1 = arith.constant 0 : i32
    %c0_i32_2 = arith.constant 0 : i32
    return %c0_i32, %c0_i32_0, %c0_i32_1 : i32, i32, i32
  }
  func.func @transform_7(%arg0: i32) -> (i32, i32) {
    %c0_i32 = arith.constant 0 : i32
    %c0_i32_0 = arith.constant 0 : i32
    %c0_i32_1 = arith.constant 0 : i32
    return %c0_i32, %c0_i32_0 : i32, i32
  }
  func.func @transform_8(%arg0: i32) -> (i32, i32) {
    %c0_i32 = arith.constant 0 : i32
    %c0_i32_0 = arith.constant 0 : i32
    %c0_i32_1 = arith.constant 0 : i32
    return %c0_i32, %c0_i32_0 : i32, i32
  }
  func.func @transform_9(%arg0: i32) -> (i32, i32) {
    %c0_i32 = arith.constant 0 : i32
    %c0_i32_0 = arith.constant 0 : i32
    %c0_i32_1 = arith.constant 0 : i32
    return %c0_i32, %c0_i32_0 : i32, i32
  }
  func.func @transform_10(%arg0: i32) -> (i32, i32) {
    %c0_i32 = arith.constant 0 : i32
    %c0_i32_0 = arith.constant 0 : i32
    return %arg0, %c0_i32 : i32, i32
  }
}

</mosaic_0001>

<llo_original>
// kernel: tpu_custom_call.1
$region0: #{tpu_custom_call.1}
  #allocation0 [shape = 'u32[]', space=smem, size = 0x4, offset = 0x4, fixed_abs, tag = 'smem constant byte address 0x4 - core index']
  #allocation1 [shape = 'u32[72,128]{1,0:T(1,128)}', space=vmem, size = 0x9000, scoped, tag = 'internal scratch']
  #allocation2 [shape = 'f32[1,1]{1,0:T(1,128)S(1)}', space=vmem, size = 0x200, scoped, tag = 'scoped memory for tpu_custom_call.1']
  %s0 = inlined_call_operand.hbm [shape: f32[8,6], index: 0, kind: input, shape index: {}]
  %s1 = inlined_call_operand.hbm [shape: f32[8,6], index: 1, kind: input, shape index: {}]
  %s2 = inlined_call_operand.hbm [shape: bf16[6,32], index: 2, kind: input, shape index: {}]
  %s3 = inlined_call_operand.vmem [shape: f32[1,32], index: 3, kind: input, shape index: {}]
  %s4 = inlined_call_operand.vmem [shape: bf16[6,32], index: 4, kind: input, shape index: {}]
  %s5 = inlined_call_operand.vmem [shape: f32[1,32], index: 5, kind: input, shape index: {}]
  %s6 = inlined_call_operand.hbm [shape: bf16[2,32,32], index: 6, kind: input, shape index: {}]
  %s7 = inlined_call_operand.vmem [shape: f32[1,32], index: 7, kind: input, shape index: {}]
  %s8 = inlined_call_operand.vmem [shape: f32[1,32], index: 8, kind: input, shape index: {}]
  %s9 = inlined_call_operand.<no memory space> [shape: f32[1,1], index: 9, kind: input, shape index: {}]
  %s10 = inlined_call_operand.vmem [shape: f32[8,1], index: 10, kind: output, shape index: {}]
  %s11 = sld [smem:[#allocation0]]
  $region66: #{tpu_custom_call.1} parent=0
    _
  %s13 = ssub.s32 1, %s11
  %s14 = scalar_select 0, %s13, %s11
  %v15 = vstv %s9
  %16 = vst [vmem:[#allocation2] sm:$0x1] %v15
  $region1: #{tpu_custom_call.1} parent=0
    #allocation3 [shape = 'u8[4096]{0}', space=vmem, size = 0x1000, scoped, tag = 'input window, operand 0, single buffered']
    #allocation4 [shape = 's32[1]{0}', space=sflag, size = 0x4, scoped, tag = 'scoped memory for tpu_custom_call.1']
    #allocation5 [shape = 'u8[4096]{0}', space=vmem, size = 0x1000, scoped, tag = 'input window, operand 1, single buffered']
    #allocation6 [shape = 's32[1]{0}', space=sflag, size = 0x4, scoped, tag = 'scoped memory for tpu_custom_call.1']
    #allocation7 [shape = 'u8[2048]{0}', space=vmem, size = 0x800, scoped, tag = 'input window, operand 2, single buffered']
    #allocation8 [shape = 'u8[16384]{0}', space=vmem, size = 0x4000, scoped, tag = 'input window, operand 6, single buffered']
    #allocation9 [shape = 's32[1]{0}', space=sflag, size = 0x4, scoped, tag = 'scoped memory for tpu_custom_call.1']
    %17 = vsyncpa [#allocation4], 0
    %18 = vsyncpa [#allocation6], 0
    %19 = vsyncpa [#allocation9], 0
    // Predicated region
    $region2: #{tpu_custom_call.1} parent=1 // pred_check
      _
    $region3: #{tpu_custom_call.1} parent=1 // pred_check_branch
      %21 = sbr.rel (0) target = $region5
    $region4: #{tpu_custom_call.1} parent=1 // pred_region
      %23 = vsyncadd [#allocation4], 0
      %s25 = sshll.u32 %s0, 4
      %s26 = int_to_ptr.hbm [resolvable:$true] %s25
      %s27 = sshll.u32 [#allocation3], 4
      %s28 = int_to_ptr.vmem [resolvable:$true] %s27
      %30 = dma.hbm_to_vmem [thread:$0]  %s26, 128, %s28, [#allocation4]
    $region5: #{tpu_custom_call.1} parent=1 // pred_fallthru
      _
    // Predicated region
    $region6: #{tpu_custom_call.1} parent=1 // pred_check
      _
    $region7: #{tpu_custom_call.1} parent=1 // pred_check_branch
      %32 = sbr.rel (0) target = $region9
    $region8: #{tpu_custom_call.1} parent=1 // pred_region
      %34 = vsyncadd [#allocation6], 0
      %s36 = sshll.u32 %s1, 4
      %s37 = int_to_ptr.hbm [resolvable:$true] %s36
      %s38 = sshll.u32 [#allocation5], 4
      %s39 = int_to_ptr.vmem [resolvable:$true] %s38
      %41 = dma.hbm_to_vmem [thread:$0]  %s37, 128, %s39, [#allocation6]
    $region9: #{tpu_custom_call.1} parent=1 // pred_fallthru
      _
    // Predicated region
    $region10: #{tpu_custom_call.1} parent=1 // pred_check
      _
    $region11: #{tpu_custom_call.1} parent=1 // pred_check_branch
      %43 = sbr.rel (0) target = $region13
    $region12: #{tpu_custom_call.1} parent=1 // pred_region
      %45 = vsyncadd [#allocation6], 0
      %s47 = sshll.u32 %s2, 4
      %s48 = int_to_ptr.hbm [resolvable:$true] %s47
      %s49 = sshll.u32 [#allocation7], 4
      %s50 = int_to_ptr.vmem [resolvable:$true] %s49
      %52 = dma.hbm_to_vmem [thread:$0]  %s48, 64, %s50, [#allocation6]
    $region13: #{tpu_custom_call.1} parent=1 // pred_fallthru
      _
    // Predicated region
    $region14: #{tpu_custom_call.1} parent=1 // pred_check
      _
    $region15: #{tpu_custom_call.1} parent=1 // pred_check_branch
      %54 = sbr.rel (0) target = $region17
    $region16: #{tpu_custom_call.1} parent=1 // pred_region
      _
    $region17: #{tpu_custom_call.1} parent=1 // pred_fallthru
      _
    // Predicated region
    $region18: #{tpu_custom_call.1} parent=1 // pred_check
      _
    $region19: #{tpu_custom_call.1} parent=1 // pred_check_branch
      %56 = sbr.rel (0) target = $region21
    $region20: #{tpu_custom_call.1} parent=1 // pred_region
      _
    $region21: #{tpu_custom_call.1} parent=1 // pred_fallthru
      _
    // Predicated region
    $region22: #{tpu_custom_call.1} parent=1 // pred_check
      _
    $region23: #{tpu_custom_call.1} parent=1 // pred_check_branch
      %58 = sbr.rel (0) target = $region25
    $region24: #{tpu_custom_call.1} parent=1 // pred_region
      _
    $region25: #{tpu_custom_call.1} parent=1 // pred_fallthru
      _
    // Predicated region
    $region26: #{tpu_custom_call.1} parent=1 // pred_check
      _
    $region27: #{tpu_custom_call.1} parent=1 // pred_check_branch
      %60 = sbr.rel (0) target = $region29
    $region28: #{tpu_custom_call.1} parent=1 // pred_region
      %62 = vsyncadd [#allocation9], 0
      %s63 = sshll.u32 %s6, 4
      %s64 = int_to_ptr.hbm [resolvable:$true] %s63
      %s65 = sshll.u32 [#allocation8], 4
      %s66 = int_to_ptr.vmem [resolvable:$true] %s65
      %71 = dma.hbm_to_vmem [thread:$0]  %s64, 512, %s66, [#allocation9], 64, 64, 4
    $region29: #{tpu_custom_call.1} parent=1 // pred_fallthru
      _
    // Predicated region
    $region30: #{tpu_custom_call.1} parent=1 // pred_check
      _
    $region31: #{tpu_custom_call.1} parent=1 // pred_check_branch
      %73 = sbr.rel (0) target = $region33
    $region32: #{tpu_custom_call.1} parent=1 // pred_region
      _
    $region33: #{tpu_custom_call.1} parent=1 // pred_fallthru
      _
    // Predicated region
    $region34: #{tpu_custom_call.1} parent=1 // pred_check
      _
    $region35: #{tpu_custom_call.1} parent=1 // pred_check_branch
      %75 = sbr.rel (0) target = $region37
    $region36: #{tpu_custom_call.1} parent=1 // pred_region
      _
    $region37: #{tpu_custom_call.1} parent=1 // pred_fallthru
      _
    // Predicated region
    $region38: #{tpu_custom_call.1} parent=1 // pred_check
      _
    $region39: #{tpu_custom_call.1} parent=1 // pred_check_branch
      %77 = sbr.rel (0) target = $region41
    $region40: #{tpu_custom_call.1} parent=1 // pred_region
      _
    $region41: #{tpu_custom_call.1} parent=1 // pred_fallthru
      _
    // Predicated region
    $region42: #{tpu_custom_call.1} parent=1 // pred_check
      _
    $region43: #{tpu_custom_call.1} parent=1 // pred_check_branch
      %79 = sbr.rel (0) target = $region45
    $region44: #{tpu_custom_call.1} parent=1 // pred_region
      %81 = dma.done [#allocation4], 128
    $region45: #{tpu_custom_call.1} parent=1 // pred_fallthru
      _
    // Predicated region
    $region46: #{tpu_custom_call.1} parent=1 // pred_check
      _
    $region47: #{tpu_custom_call.1} parent=1 // pred_check_branch
      %83 = sbr.rel (0) target = $region49
    $region48: #{tpu_custom_call.1} parent=1 // pred_region
      %85 = dma.done [#allocation6], 128
    $region49: #{tpu_custom_call.1} parent=1 // pred_fallthru
      _
    // Predicated region
    $region50: #{tpu_custom_call.1} parent=1 // pred_check
      _
    $region51: #{tpu_custom_call.1} parent=1 // pred_check_branch
      %87 = sbr.rel (0) target = $region53
    $region52: #{tpu_custom_call.1} parent=1 // pred_region
      %89 = dma.done [#allocation6], 64
    $region53: #{tpu_custom_call.1} parent=1 // pred_fallthru
      _
    // Predicated region
    $region54: #{tpu_custom_call.1} parent=1 // pred_check
      _
    $region55: #{tpu_custom_call.1} parent=1 // pred_check_branch
      %91 = sbr.rel (0) target = $region57
    $region56: #{tpu_custom_call.1} parent=1 // pred_region
      %93 = dma.done [#allocation9], 512
    $region57: #{tpu_custom_call.1} parent=1 // pred_fallthru
      _
    %v95 = vld [vmem:[#allocation3] sm:$0xff]
    %v96 = vpack.c.bf16 %v95, %v95
    %v97 = vld [vmem:[#allocation7] sm:$0x7]
    %v98 = vld [vmem:[%s3] sm:$0x1]
    %v100 = vperm.slane %v98, 0
    %vm102 = vcmask 48128
    %v104 = vsel %vm102, %v96, 0
    %vm106 = vcmask 1042432
    %v108 = vsel %vm106, %v97, 0
    %110 = vmatpush.bf16.msra.mxu0 0
    %111 = vmatpush.bf16.msra.mxu0 0
    %112 = vmatpush.bf16.msra.mxu0 0
    %113 = vmatpush.bf16.msra.mxu0 0
    %114 = vmatpush.bf16.msra.mxu0 0
    %115 = vmatpush.bf16.msra.mxu0 0
    %116 = vmatpush.bf16.msra.mxu0 0
    %117 = vmatpush.bf16.msra.mxu0 %v108
    %118 = vmatmul.bf16.gmra.mxu0 %v104
    %v119 = vpop.f32.mrf.mxu0
    %v120 = vadd.f32 %v100, %v119
    %v121 = vpop.f32.mrf.mxu0
    %122 = vdwg.mxu0
    %v123 = vld [vmem:[#allocation5] sm:$0xff]
    %v124 = vpack.c.bf16 %v123, %v123
    %v125 = vld [vmem:[%s4] sm:$0x7]
    %v126 = vld [vmem:[%s5] sm:$0x1]
    %v128 = vperm.slane %v126, 0
    %v131 = vsel %vm102, %v124, 0
    %v134 = vsel %vm106, %v125, 0
    %136 = vmatpush.bf16.msra.mxu0 0
    %137 = vmatpush.bf16.msra.mxu0 0
    %138 = vmatpush.bf16.msra.mxu0 0
    %139 = vmatpush.bf16.msra.mxu0 0
    %140 = vmatpush.bf16.msra.mxu0 0
    %141 = vmatpush.bf16.msra.mxu0 0
    %142 = vmatpush.bf16.msra.mxu0 0
    %143 = vmatpush.bf16.msra.mxu0 %v134
    %144 = vmatmul.bf16.gmra.mxu0 %v131
    %v145 = vpop.f32.mrf.mxu0
    %v146 = vadd.f32 %v128, %v145
    %v147 = vpop.f32.mrf.mxu0
    %148 = vdwg.mxu0
    %v149 = vmax.f32 %v120, 0.0
    %v150 = vmax.f32 %v146, 0.0
    %v151 = vpack.c.bf16 %v149, %v149
    %v152 = vld [vmem:[#allocation8] sm:$0xf]
    %v153 = vld [vmem:[#allocation8 + $0x4] sm:$0xf]
    %v154 = vld [vmem:[#allocation8 + $0x8] sm:$0xf]
    %v155 = vld [vmem:[#allocation8 + $0xc] sm:$0xf]
    %v156 = vpack.c.bf16 %v150, %v150
    %s157 = scalar_lea.vmem [#allocation8], 16
    %v158 = vld [vmem:[%s157] sm:$0xf]
    %v159 = vld [vmem:[%s157 + $0x4] sm:$0xf]
    %v160 = vld [vmem:[%s157 + $0x8] sm:$0xf]
    %v161 = vld [vmem:[%s157 + $0xc] sm:$0xf]
    %v166 = vunpack.c.l.b16 %v158
    %v167 = vunpack.c.l.b16 %v159
    %v168 = vunpack.c.l.b16 %v160
    %v169 = vunpack.c.l.b16 %v161
    %v170 = vpack.c.b16 %v167, %v166
    %v171 = vpack.c.b16 %v169, %v168
    %vm174 = vcmask 261120
    %v176 = vsel %vm174, %v156, 0
    %178 = vmatpush.bf16.msra.mxu0 0
    %179 = vmatpush.bf16.msra.mxu0 0
    %180 = vmatpush.bf16.msra.mxu0 0
    %181 = vmatpush.bf16.msra.mxu0 0
    %182 = vmatpush.bf16.msra.mxu0 0
    %183 = vmatpush.bf16.msra.mxu0 0
    %184 = vmatpush.bf16.msra.mxu0 %v171
    %185 = vmatpush.bf16.msra.mxu0 %v170
    %186 = vmatmul.bf16.gmra.mxu0 %v176
    %v187 = vpop.f32.mrf.mxu0
    %v188 = vadd.f32 0.0, %v187
    %v189 = vpop.f32.mrf.mxu0
    %190 = vdwg.mxu0
    %v195 = vunpack.c.l.b16 %v152
    %v196 = vunpack.c.l.b16 %v153
    %v197 = vunpack.c.l.b16 %v154
    %v198 = vunpack.c.l.b16 %v155
    %v199 = vpack.c.b16 %v196, %v195
    %v200 = vpack.c.b16 %v198, %v197
    %v204 = vsel %vm174, %v151, 0
    %206 = vmatpush.bf16.msra.mxu0 0
    %207 = vmatpush.bf16.msra.mxu0 0
    %208 = vmatpush.bf16.msra.mxu0 0
    %209 = vmatpush.bf16.msra.mxu0 0
    %210 = vmatpush.bf16.msra.mxu0 0
    %211 = vmatpush.bf16.msra.mxu0 0
    %212 = vmatpush.bf16.msra.mxu0 %v200
    %213 = vmatpush.bf16.msra.mxu0 %v199
    %214 = vmatmul.bf16.gmra.mxu0 %v204
    %v215 = vpop.f32.mrf.mxu0
    %v216 = vadd.f32 %v188, %v215
    %v217 = vpop.f32.mrf.mxu0
    %218 = vdwg.mxu0
    %v219 = vld [vmem:[%s7] sm:$0x1]
    %v221 = vperm.slane %v219, 0
    %v223 = vadd.f32 %v216, %v221
    %v224 = vmax.f32 %v223, 0.0
    %v225 = vld [vmem:[%s8] sm:$0x1]
    %v227 = vperm.slane %v225, 0
    %v229 = vmul.f32 %v224, %v227
    %v230 = vsel %vm174, %v229, 0.0
    %231 = vadd.xlane.f32.xlu0 %v230
    %v232 = vpop.xlane.xlu0 %231
    %v233 = vld [vmem:[#allocation2] sm:$0x1]
    %v235 = vperm.slane %v233, 0
    %v237 = vadd.f32 %v232, %v235
    %vm238 = vcmask 7168
    %239 = vst.msk [vmem:[%s10] sm:$0xff] %vm238, %v237
    // Predicated region
    $region58: #{tpu_custom_call.1} parent=1 // pred_check
      _
    $region59: #{tpu_custom_call.1} parent=1 // pred_check_branch
      %241 = sbr.rel (0) target = $region61
    $region60: #{tpu_custom_call.1} parent=1 // pred_region
      _
    $region61: #{tpu_custom_call.1} parent=1 // pred_fallthru
      _
    // Predicated region
    $region62: #{tpu_custom_call.1} parent=1 // pred_check
      _
    $region63: #{tpu_custom_call.1} parent=1 // pred_check_branch
      %243 = sbr.rel (0) target = $region65
    $region64: #{tpu_custom_call.1} parent=1 // pred_region
      _
    $region65: #{tpu_custom_call.1} parent=1 // pred_fallthru
      _
    %244 = vsyncpa [#allocation4], 1
    %245 = vsyncpa [#allocation6], 1
    %246 = vsyncpa [#allocation9], 1

// kernel: tpu_custom_call.1
$region0: #{tpu_custom_call.1}
  #allocation0 [shape = 'u32[]', space=smem, size = 0x4, offset = 0x4, fixed_abs, tag = 'smem constant byte address 0x4 - core index']
  #allocation1 [shape = 'u32[72,128]{1,0:T(1,128)}', space=vmem, size = 0x9000, scoped, tag = 'internal scratch']
  #allocation2 [shape = 'f32[1,1]{1,0:T(1,128)S(1)}', space=vmem, size = 0x200, scoped, tag = 'scoped memory for tpu_custom_call.1']
  %s0 = inlined_call_operand.hbm [shape: f32[8,6], index: 0, kind: input, shape index: {}]
  %s1 = inlined_call_operand.hbm [shape: f32[8,6], index: 1, kind: input, shape index: {}]
  %s2 = inlined_call_operand.hbm [shape: bf16[6,32], index: 2, kind: input, shape index: {}]
  %s3 = inlined_call_operand.vmem [shape: f32[1,32], index: 3, kind: input, shape index: {}]
  %s4 = inlined_call_operand.vmem [shape: bf16[6,32], index: 4, kind: input, shape index: {}]
  %s5 = inlined_call_operand.vmem [shape: f32[1,32], index: 5, kind: input, shape index: {}]
  %s6 = inlined_call_operand.hbm [shape: bf16[2,32,32], index: 6, kind: input, shape index: {}]
  %s7 = inlined_call_operand.vmem [shape: f32[1,32], index: 7, kind: input, shape index: {}]
  %s8 = inlined_call_operand.vmem [shape: f32[1,32], index: 8, kind: input, shape index: {}]
  %s9 = inlined_call_operand.<no memory space> [shape: f32[1,1], index: 9, kind: input, shape index: {}]
  %s10 = inlined_call_operand.vmem [shape: f32[8,1], index: 10, kind: output, shape index: {}]
  %s11 = sld [smem:[#allocation0]]
  $region66: #{tpu_custom_call.1} parent=0
    _
  %s13 = ssub.s32 1, %s11
  %s14 = scalar_select 0, %s13, %s11
  %v15 = vstv %s9
  %16 = vst [vmem:[#allocation2] sm:$0x1] %v15
  $region1: #{tpu_custom_call.1} parent=0
    #allocation3 [shape = 'u8[4096]{0}', space=vmem, size = 0x1000, scoped, tag = 'input window, operand 0, single buffered']
    #allocation4 [shape = 's32[1]{0}', space=sflag, size = 0x4, scoped, tag = 'scoped memory for tpu_custom_call.1']
    #allocation5 [shape = 'u8[4096]{0}', space=vmem, size = 0x1000, scoped, tag = 'input window, operand 1, single buffered']
    #allocation6 [shape = 's32[1]{0}', space=sflag, size = 0x4, scoped, tag = 'scoped memory for tpu_custom_call.1']
    #allocation7 [shape = 'u8[2048]{0}', space=vmem, size = 0x800, scoped, tag = 'input window, operand 2, single buffered']
    #allocation8 [shape = 'u8[16384]{0}', space=vmem, size = 0x4000, scoped, tag = 'input window, operand 6, single buffered']
    #allocation9 [shape = 's32[1]{0}', space=sflag, size = 0x4, scoped, tag = 'scoped memory for tpu_custom_call.1']
    %17 = vsyncpa [#allocation4], 0
    %18 = vsyncpa [#allocation6], 0
    %19 = vsyncpa [#allocation9], 0
    // Predicated region
    $region2: #{tpu_custom_call.1} parent=1 // pred_check
      _
    $region3: #{tpu_custom_call.1} parent=1 // pred_check_branch
      %21 = sbr.rel (0) target = $region5
    $region4: #{tpu_custom_call.1} parent=1 // pred_region
      %23 = vsyncadd [#allocation4], 0
      %s25 = sshll.u32 %s0, 4
      %s26 = int_to_ptr.hbm [resolvable:$true] %s25
      %s27 = sshll.u32 [#allocation3], 4
      %s28 = int_to_ptr.vmem [resolvable:$true] %s27
      %30 = dma.hbm_to_vmem [thread:$0]  %s26, 128, %s28, [#allocation4]
    $region5: #{tpu_custom_call.1} parent=1 // pred_fallthru
      _
    // Predicated region
    $region6: #{tpu_custom_call.1} parent=1 // pred_check
      _
    $region7: #{tpu_custom_call.1} parent=1 // pred_check_branch
      %32 = sbr.rel (0) target = $region9
    $region8: #{tpu_custom_call.1} parent=1 // pred_region
      %34 = vsyncadd [#allocation6], 0
      %s36 = sshll.u32 %s1, 4
      %s37 = int_to_ptr.hbm [resolvable:$true] %s36
      %s38 = sshll.u32 [#allocation5], 4
      %s39 = int_to_ptr.vmem [resolvable:$true] %s38
      %41 = dma.hbm_to_vmem [thread:$0]  %s37, 128, %s39, [#allocation6]
    $region9: #{tpu_custom_call.1} parent=1 // pred_fallthru
      _
    // Predicated region
    $region10: #{tpu_custom_call.1} parent=1 // pred_check
      _
    $region11: #{tpu_custom_call.1} parent=1 // pred_check_branch
      %43 = sbr.rel (0) target = $region13
    $region12: #{tpu_custom_call.1} parent=1 // pred_region
      %45 = vsyncadd [#allocation6], 0
      %s47 = sshll.u32 %s2, 4
      %s48 = int_to_ptr.hbm [resolvable:$true] %s47
      %s49 = sshll.u32 [#allocation7], 4
      %s50 = int_to_ptr.vmem [resolvable:$true] %s49
      %52 = dma.hbm_to_vmem [thread:$0]  %s48, 64, %s50, [#allocation6]
    $region13: #{tpu_custom_call.1} parent=1 // pred_fallthru
      _
    // Predicated region
    $region14: #{tpu_custom_call.1} parent=1 // pred_check
      _
    $region15: #{tpu_custom_call.1} parent=1 // pred_check_branch
      %54 = sbr.rel (0) target = $region17
    $region16: #{tpu_custom_call.1} parent=1 // pred_region
      _
    $region17: #{tpu_custom_call.1} parent=1 // pred_fallthru
      _
    // Predicated region
    $region18: #{tpu_custom_call.1} parent=1 // pred_check
      _
    $region19: #{tpu_custom_call.1} parent=1 // pred_check_branch
      %56 = sbr.rel (0) target = $region21
    $region20: #{tpu_custom_call.1} parent=1 // pred_region
      _
    $region21: #{tpu_custom_call.1} parent=1 // pred_fallthru
      _
    // Predicated region
    $region22: #{tpu_custom_call.1} parent=1 // pred_check
      _
    $region23: #{tpu_custom_call.1} parent=1 // pred_check_branch
      %58 = sbr.rel (0) target = $region25
    $region24: #{tpu_custom_call.1} parent=1 // pred_region
      _
    $region25: #{tpu_custom_call.1} parent=1 // pred_fallthru
      _
    // Predicated region
    $region26: #{tpu_custom_call.1} parent=1 // pred_check
      _
    $region27: #{tpu_custom_call.1} parent=1 // pred_check_branch
      %60 = sbr.rel (0) target = $region29
    $region28: #{tpu_custom_call.1} parent=1 // pred_region
      %62 = vsyncadd [#allocation9], 0
      %s63 = sshll.u32 %s6, 4
      %s64 = int_to_ptr.hbm [resolvable:$true] %s63
      %s65 = sshll.u32 [#allocation8], 4
      %s66 = int_to_ptr.vmem [resolvable:$true] %s65
      %71 = dma.hbm_to_vmem [thread:$0]  %s64, 512, %s66, [#allocation9], 64, 64, 4
    $region29: #{tpu_custom_call.1} parent=1 // pred_fallthru
      _
    // Predicated region
    $region30: #{tpu_custom_call.1} parent=1 // pred_check
      _
    $region31: #{tpu_custom_call.1} parent=1 // pred_check_branch
      %73 = sbr.rel (0) target = $region33
    $region32: #{tpu_custom_call.1} parent=1 // pred_region
      _
    $region33: #{tpu_custom_call.1} parent=1 // pred_fallthru
      _
    // Predicated region
    $region34: #{tpu_custom_call.1} parent=1 // pred_check
      _
    $region35: #{tpu_custom_call.1} parent=1 // pred_check_branch
      %75 = sbr.rel (0) target = $region37
    $region36: #{tpu_custom_call.1} parent=1 // pred_region
      _
    $region37: #{tpu_custom_call.1} parent=1 // pred_fallthru
      _
    // Predicated region
    $region38: #{tpu_custom_call.1} parent=1 // pred_check
      _
    $region39: #{tpu_custom_call.1} parent=1 // pred_check_branch
      %77 = sbr.rel (0) target = $region41
    $region40: #{tpu_custom_call.1} parent=1 // pred_region
      _
    $region41: #{tpu_custom_call.1} parent=1 // pred_fallthru
      _
    // Predicated region
    $region42: #{tpu_custom_call.1} parent=1 // pred_check
      _
    $region43: #{tpu_custom_call.1} parent=1 // pred_check_branch
      %79 = sbr.rel (0) target = $region45
    $region44: #{tpu_custom_call.1} parent=1 // pred_region
      %81 = dma.done [#allocation4], 128
    $region45: #{tpu_custom_call.1} parent=1 // pred_fallthru
      _
    // Predicated region
    $region46: #{tpu_custom_call.1} parent=1 // pred_check
      _
    $region47: #{tpu_custom_call.1} parent=1 // pred_check_branch
      %83 = sbr.rel (0) target = $region49
    $region48: #{tpu_custom_call.1} parent=1 // pred_region
      %85 = dma.done [#allocation6], 128
    $region49: #{tpu_custom_call.1} parent=1 // pred_fallthru
      _
    // Predicated region
    $region50: #{tpu_custom_call.1} parent=1 // pred_check
      _
    $region51: #{tpu_custom_call.1} parent=1 // pred_check_branch
      %87 = sbr.rel (0) target = $region53
    $region52: #{tpu_custom_call.1} parent=1 // pred_region
      %89 = dma.done [#allocation6], 64
    $region53: #{tpu_custom_call.1} parent=1 // pred_fallthru
      _
    // Predicated region
    $region54: #{tpu_custom_call.1} parent=1 // pred_check
      _
    $region55: #{tpu_custom_call.1} parent=1 // pred_check_branch
      %91 = sbr.rel (0) target = $region57
    $region56: #{tpu_custom_call.1} parent=1 // pred_region
      %93 = dma.done [#allocation9], 512
    $region57: #{tpu_custom_call.1} parent=1 // pred_fallthru
      _
    %v95 = vld [vmem:[#allocation3] sm:$0xff]
    %v96 = vpack.c.bf16 %v95, %v95
    %v97 = vld [vmem:[#allocation7] sm:$0x7]
    %v98 = vld [vmem:[%s3] sm:$0x1]
    %v100 = vperm.slane %v98, 0
    %vm102 = vcmask 48128
    %v104 = vsel %vm102, %v96, 0
    %vm106 = vcmask 1042432
    %v108 = vsel %vm106, %v97, 0
    %110 = vmatpush.bf16.msra.mxu0 0
    %111 = vmatpush.bf16.msra.mxu0 0
    %112 = vmatpush.bf16.msra.mxu0 0
    %113 = vmatpush.bf16.msra.mxu0 0
    %114 = vmatpush.bf16.msra.mxu0 0
    %115 = vmatpush.bf16.msra.mxu0 0
    %116 = vmatpush.bf16.msra.mxu0 0
    %117 = vmatpush.bf16.msra.mxu0 %v108
    %118 = vmatmul.bf16.gmra.mxu0 %v104
    %v119 = vpop.f32.mrf.mxu0
    %v120 = vadd.f32 %v100, %v119
    %v121 = vpop.f32.mrf.mxu0
    %122 = vdwg.mxu0
    %v123 = vld [vmem:[#allocation5] sm:$0xff]
    %v124 = vpack.c.bf16 %v123, %v123
    %v125 = vld [vmem:[%s4] sm:$0x7]
    %v126 = vld [vmem:[%s5] sm:$0x1]
    %v128 = vperm.slane %v126, 0
    %v131 = vsel %vm102, %v124, 0
    %v134 = vsel %vm106, %v125, 0
    %136 = vmatpush.bf16.msra.mxu0 0
    %137 = vmatpush.bf16.msra.mxu0 0
    %138 = vmatpush.bf16.msra.mxu0 0
    %139 = vmatpush.bf16.msra.mxu0 0
    %140 = vmatpush.bf16.msra.mxu0 0
    %141 = vmatpush.bf16.msra.mxu0 0
    %142 = vmatpush.bf16.msra.mxu0 0
    %143 = vmatpush.bf16.msra.mxu0 %v134
    %144 = vmatmul.bf16.gmra.mxu0 %v131
    %v145 = vpop.f32.mrf.mxu0
    %v146 = vadd.f32 %v128, %v145
    %v147 = vpop.f32.mrf.mxu0
    %148 = vdwg.mxu0
    %v149 = vmax.f32 %v120, 0.0
    %v150 = vmax.f32 %v146, 0.0
    %v151 = vpack.c.bf16 %v149, %v149
    %v152 = vld [vmem:[#allocation8] sm:$0xf]
    %v153 = vld [vmem:[#allocation8 + $0x4] sm:$0xf]
    %v154 = vld [vmem:[#allocation8 + $0x8] sm:$0xf]
    %v155 = vld [vmem:[#allocation8 + $0xc] sm:$0xf]
    %v156 = vpack.c.bf16 %v150, %v150
    %s157 = scalar_lea.vmem [#allocation8], 16
    %v158 = vld [vmem:[%s157] sm:$0xf]
    %v159 = vld [vmem:[%s157 + $0x4] sm:$0xf]
    %v160 = vld [vmem:[%s157 + $0x8] sm:$0xf]
    %v161 = vld [vmem:[%s157 + $0xc] sm:$0xf]
    %v166 = vunpack.c.l.b16 %v158
    %v167 = vunpack.c.l.b16 %v159
    %v168 = vunpack.c.l.b16 %v160
    %v169 = vunpack.c.l.b16 %v161
    %v170 = vpack.c.b16 %v167, %v166
    %v171 = vpack.c.b16 %v169, %v168
    %vm174 = vcmask 261120
    %v176 = vsel %vm174, %v156, 0
    %178 = vmatpush.bf16.msra.mxu0 0
    %179 = vmatpush.bf16.msra.mxu0 0
    %180 = vmatpush.bf16.msra.mxu0 0
    %181 = vmatpush.bf16.msra.mxu0 0
    %182 = vmatpush.bf16.msra.mxu0 0
    %183 = vmatpush.bf16.msra.mxu0 0
    %184 = vmatpush.bf16.msra.mxu0 %v171
    %185 = vmatpush.bf16.msra.mxu0 %v170
    %186 = vmatmul.bf16.gmra.mxu0 %v176
    %v187 = vpop.f32.mrf.mxu0
    %v188 = vadd.f32 0.0, %v187
    %v189 = vpop.f32.mrf.mxu0
    %190 = vdwg.mxu0
    %v195 = vunpack.c.l.b16 %v152
    %v196 = vunpack.c.l.b16 %v153
    %v197 = vunpack.c.l.b16 %v154
    %v198 = vunpack.c.l.b16 %v155
    %v199 = vpack.c.b16 %v196, %v195
    %v200 = vpack.c.b16 %v198, %v197
    %v204 = vsel %vm174, %v151, 0
    %206 = vmatpush.bf16.msra.mxu0 0
    %207 = vmatpush.bf16.msra.mxu0 0
    %208 = vmatpush.bf16.msra.mxu0 0
    %209 = vmatpush.bf16.msra.mxu0 0
    %210 = vmatpush.bf16.msra.mxu0 0
    %211 = vmatpush.bf16.msra.mxu0 0
    %212 = vmatpush.bf16.msra.mxu0 %v200
    %213 = vmatpush.bf16.msra.mxu0 %v199
    %214 = vmatmul.bf16.gmra.mxu0 %v204
    %v215 = vpop.f32.mrf.mxu0
    %v216 = vadd.f32 %v188, %v215
    %v217 = vpop.f32.mrf.mxu0
    %218 = vdwg.mxu0
    %v219 = vld [vmem:[%s7] sm:$0x1]
    %v221 = vperm.slane %v219, 0
    %v223 = vadd.f32 %v216, %v221
    %v224 = vmax.f32 %v223, 0.0
    %v225 = vld [vmem:[%s8] sm:$0x1]
    %v227 = vperm.slane %v225, 0
    %v229 = vmul.f32 %v224, %v227
    %v230 = vsel %vm174, %v229, 0.0
    %231 = vadd.xlane.f32.xlu0 %v230
    %v232 = vpop.xlane.xlu0 %231
    %v233 = vld [vmem:[#allocation2] sm:$0x1]
    %v235 = vperm.slane %v233, 0
    %v237 = vadd.f32 %v232, %v235
    %vm238 = vcmask 7168
    %239 = vst.msk [vmem:[%s10] sm:$0xff] %vm238, %v237
    // Predicated region
    $region58: #{tpu_custom_call.1} parent=1 // pred_check
      _
    $region59: #{tpu_custom_call.1} parent=1 // pred_check_branch
      %241 = sbr.rel (0) target = $region61
    $region60: #{tpu_custom_call.1} parent=1 // pred_region
      _
    $region61: #{tpu_custom_call.1} parent=1 // pred_fallthru
      _
    // Predicated region
    $region62: #{tpu_custom_call.1} parent=1 // pred_check
      _
    $region63: #{tpu_custom_call.1} parent=1 // pred_check_branch
      %243 = sbr.rel (0) target = $region65
    $region64: #{tpu_custom_call.1} parent=1 // pred_region
      _
    $region65: #{tpu_custom_call.1} parent=1 // pred_fallthru
      _
    %244 = vsyncpa [#allocation4], 1
    %245 = vsyncpa [#allocation6], 1
    %246 = vsyncpa [#allocation9], 1

</llo_original>
